<compile_context>
chip_gen: v7x
topology: tpu7x:2x2x1
jax: 0.10.0
libtpu: 0.0.40
codegen_flags: <defaults>
</compile_context>

<pallas_src>
import functools

import jax
import jax.numpy as jnp
from jax import lax
from jax.experimental import pallas as pl
from jax.experimental.pallas import tpu as pltpu  # noqa: F401  (TPU backend)

_LANES = 128
_SUBLANES = 8
_EPS = 1e-12        # F.normalize eps
_NEG_BIG = -1e30    # bias for padded softmax lanes -> exp underflows to exact 0


def _qnet_kernel(xp_ref, wb_ref, w2b_ref, o_ref, *, d1_pad: int):
    xp = xp_ref[...]                        # [Np, 2*D0 + 2]
    wb = wb_ref[...]                        # [2*D0 + 2, D1p]

    # Both branch linears + both biases in a single MXU pass.
    h = jnp.dot(xp, wb, preferred_element_type=jnp.float32)     # [Np, D1p]

    # L2 normalize (dim=1) + ReLU, one pass over all (concatenated) rows.
    # rsqrt(max(ss, eps^2)) == 1 / max(||h||, eps)  (exact F.normalize math).
    ss = jnp.sum(h * h, axis=1, keepdims=True)
    h = h * lax.rsqrt(jnp.maximum(ss, _EPS * _EPS))              # EUP rsqrt
    h = jnp.maximum(h, 0.0)

    # Shared head: lin2 (bias packed as row d1_pad of w2b_ref) + row softmax.
    # Both slices start at sublane-aligned rows (d1_pad % 8 == 0): no copies.
    w2 = w2b_ref[:d1_pad, :]                # [D1p, D2p]
    b2 = w2b_ref[d1_pad:d1_pad + 1, :]      # [1,   D2p]  (pad lanes = -1e30)
    logits = jnp.dot(h, w2, preferred_element_type=jnp.float32) + b2
    m = jnp.max(logits, axis=-1, keepdims=True)
    e = jnp.exp(logits - m)                 # padded lanes -> exactly 0
    denom = jnp.sum(e, axis=-1, keepdims=True)
    o_ref[...] = e * pl.reciprocal(denom)   # single lane-dense full-block store


def qnet_forward(x, cluster, w1, b1, wc, bc, w2, b2):
    """Forward of my_Q_net. Weights stored as [in_features, out_features]."""
    nx, d0 = x.shape
    nc, d0c = cluster.shape
    assert d0c == d0
    d1 = w1.shape[1]
    d2 = w2.shape[1]
    f32 = jnp.float32

    n = nx + nc
    n_pad = -(-n // _SUBLANES) * _SUBLANES          # sublane-aligned rows
    d1_pad = -(-d1 // _SUBLANES) * _SUBLANES        # sublane-aligned hidden dim
    d2_pad = -(-d2 // _LANES) * _LANES              # lane-dense output
    kin = 2 * d0 + 2

    # ---- host-side packing (pure layout plumbing; weight packs reusable) ----
    xp = jnp.zeros((n_pad, kin), f32)
    xp = xp.at[:nx, :d0].set(x.astype(f32))
    xp = xp.at[nx:n, d0:2 * d0].set(cluster.astype(f32))
    xp = xp.at[:nx, 2 * d0].set(1.0)                # selects b1
    xp = xp.at[nx:n, 2 * d0 + 1].set(1.0)           # selects bc

    wb = jnp.zeros((kin, d1_pad), f32)              # pad cols stay exactly 0
    wb = wb.at[:d0, :d1].set(w1.astype(f32))
    wb = wb.at[d0:2 * d0, :d1].set(wc.astype(f32))
    wb = wb.at[2 * d0, :d1].set(b1.astype(f32))
    wb = wb.at[2 * d0 + 1, :d1].set(bc.astype(f32))

    w2b = jnp.zeros((d1_pad + 1, d2_pad), f32)      # [w2 (row-padded) ; b2]
    w2b = w2b.at[:d1, :d2].set(w2.astype(f32))
    w2b = w2b.at[d1_pad, :].set(_NEG_BIG)           # kill padded softmax lanes
    w2b = w2b.at[d1_pad, :d2].set(b2.astype(f32))

    full = lambda shape: pl.BlockSpec(shape, lambda: (0,) * len(shape))

    out = pl.pallas_call(
        functools.partial(_qnet_kernel, d1_pad=d1_pad),
        out_shape=jax.ShapeDtypeStruct((n_pad, d2_pad), f32),
        grid=(),
        in_specs=[
            full((n_pad, kin)),            # packed x / cluster (+ bias selectors)
            full((kin, d1_pad)),           # packed w1 | wc | b1 | bc
            full((d1_pad + 1, d2_pad)),    # packed, lane-padded w2 | b2
        ],
        out_specs=full((n_pad, d2_pad)),
    )(xp, wb, w2b)

    return out[:n, :d2]


if __name__ == "__main__":
    # dims = (D0, D1, D2) as in my_Q_net(dims)
    D0, D1, D2 = 16, 32, 8
    Nx, Nc = 8, 8

    key = jax.random.PRNGKey(0)
    keys = jax.random.split(key, 8)

    def lin_init(kw, kb, fan_in, fan_out):
        bound = 1.0 / jnp.sqrt(fan_in)
        w = jax.random.uniform(kw, (fan_in, fan_out), jnp.float32, -bound, bound)
        b = jax.random.uniform(kb, (fan_out,), jnp.float32, -bound, bound)
        return w, b

    w1, b1 = lin_init(keys[0], keys[1], D0, D1)
    wc, bc = lin_init(keys[2], keys[3], D0, D1)
    w2, b2 = lin_init(keys[4], keys[5], D1, D2)

    x = jax.random.normal(keys[6], (Nx, D0), jnp.float32)
    cluster = jax.random.normal(keys[7], (Nc, D0), jnp.float32)

    run = jax.jit(qnet_forward)
    out = jax.block_until_ready(run(x, cluster, w1, b1, wc, bc, w2, b2))

    # Reference (same math as the PyTorch module) in plain JAX.
    def ref():
        def branch(inp, w, b):
            h = inp @ w + b
            nrm = jnp.sqrt(jnp.sum(h * h, axis=1, keepdims=True))
            return jnp.maximum(h / jnp.maximum(nrm, 1e-12), 0.0)
        z = jnp.concatenate([branch(x, w1, b1), branch(cluster, wc, bc)], axis=0)
        return jax.nn.softmax(z @ w2 + b2, axis=-1)

    assert out.shape == (Nx + Nc, D2)
    assert jnp.allclose(out, ref(), atol=1e-5, rtol=1e-5)

    print("KERNEL_OK")
</pallas_src>

<mosaic_0001>
module attributes {stable_mosaic.version = 11 : i64} {
  func.func @_qnet_kernel(%arg0: memref<16x34xf32, #tpu.memory_space<vmem>>, %arg1: memref<34x32xf32, #tpu.memory_space<vmem>>, %arg2: memref<33x128xf32, #tpu.memory_space<vmem>>, %arg3: memref<16x128xf32, #tpu.memory_space<vmem>>) attributes {dimension_semantics = [], scalar_prefetch = 0 : i64, scratch_operands = 0 : i64, tpu.core_type = #tpu.core_type<tc>} {
    %c0 = arith.constant 0 : index
    %c0_0 = arith.constant 0 : index
    %0 = vector.load %arg0[%c0, %c0_0] : memref<16x34xf32, #tpu.memory_space<vmem>>, vector<16x34xf32>
    %c0_1 = arith.constant 0 : index
    %c0_2 = arith.constant 0 : index
    %1 = vector.load %arg1[%c0_1, %c0_2] : memref<34x32xf32, #tpu.memory_space<vmem>>, vector<34x32xf32>
    %cst = arith.constant dense<0.000000e+00> : vector<16x32xf32>
    %2 = tpu.matmul %0, %1, %cst {dimension_numbers = #tpu.dot_dimension_numbers<[1], [0], [0], [1], [0, 0, 1, 1], [], []>} : vector<16x34xf32>, vector<34x32xf32>, vector<16x32xf32> -> vector<16x32xf32>
    %3 = arith.mulf %2, %2 : vector<16x32xf32>
    %cst_3 = arith.constant dense<0.000000e+00> : vector<16xf32>
    %4 = vector.multi_reduction <add>, %3, %cst_3 [1] : vector<16x32xf32> to vector<16xf32>
    %5 = vector.shape_cast %4 : vector<16xf32> to vector<16x1xf32>
    %cst_4 = arith.constant 1.000000e-24 : f32
    %6 = vector.broadcast %cst_4 : f32 to vector<16x1xf32>
    %7 = arith.maximumf %5, %6 : vector<16x1xf32>
    %8 = math.rsqrt %7 : vector<16x1xf32>
    %9 = vector.broadcast %8 : vector<16x1xf32> to vector<16x32xf32>
    %10 = arith.mulf %2, %9 : vector<16x32xf32>
    %cst_5 = arith.constant 0.000000e+00 : f32
    %11 = vector.broadcast %cst_5 : f32 to vector<16x32xf32>
    %12 = arith.maximumf %10, %11 : vector<16x32xf32>
    %c0_6 = arith.constant 0 : index
    %c0_7 = arith.constant 0 : index
    %13 = vector.load %arg2[%c0_6, %c0_7] : memref<33x128xf32, #tpu.memory_space<vmem>>, vector<32x128xf32>
    %c32 = arith.constant 32 : index
    %c0_8 = arith.constant 0 : index
    %14 = vector.load %arg2[%c32, %c0_8] : memref<33x128xf32, #tpu.memory_space<vmem>>, vector<1x128xf32>
    %cst_9 = arith.constant dense<0.000000e+00> : vector<16x128xf32>
    %15 = tpu.matmul %12, %13, %cst_9 {dimension_numbers = #tpu.dot_dimension_numbers<[1], [0], [0], [1], [0, 0, 1, 1], [], []>} : vector<16x32xf32>, vector<32x128xf32>, vector<16x128xf32> -> vector<16x128xf32>
    %16 = vector.broadcast %14 : vector<1x128xf32> to vector<16x128xf32>
    %17 = arith.addf %15, %16 : vector<16x128xf32>
    %cst_10 = arith.constant dense<0xFF800000> : vector<16xf32>
    %18 = vector.multi_reduction <maximumf>, %17, %cst_10 [1] : vector<16x128xf32> to vector<16xf32>
    %19 = vector.shape_cast %18 : vector<16xf32> to vector<16x1xf32>
    %20 = vector.broadcast %19 : vector<16x1xf32> to vector<16x128xf32>
    %21 = arith.subf %17, %20 : vector<16x128xf32>
    %22 = math.exp %21 : vector<16x128xf32>
    %cst_11 = arith.constant dense<0.000000e+00> : vector<16xf32>
    %23 = vector.multi_reduction <add>, %22, %cst_11 [1] : vector<16x128xf32> to vector<16xf32>
    %24 = vector.shape_cast %23 : vector<16xf32> to vector<16x1xf32>
    %25 = tpu.reciprocal %24 : vector<16x1xf32> -> vector<16x1xf32>
    %26 = vector.broadcast %25 : vector<16x1xf32> to vector<16x128xf32>
    %27 = arith.mulf %22, %26 : vector<16x128xf32>
    %c0_12 = arith.constant 0 : index
    %c0_13 = arith.constant 0 : index
    %28 = vector.load %arg3[%c0_12, %c0_13] : memref<16x128xf32, #tpu.memory_space<vmem>>, vector<16x128xf32>
    tpu.vector_store %arg3[%c0_12, %c0_13], %27 {strides = array<i32>} : memref<16x128xf32, #tpu.memory_space<vmem>>, vector<16x128xf32>,
    return
  }
}

</mosaic_0001>

<llo_original>
// kernel: qnet_forward.1
$region0: #{qnet_forward.1}
  #allocation0 [shape = 'u32[]', space=smem, size = 0x4, offset = 0x4, fixed_abs, tag = 'smem constant byte address 0x4 - core index']
  #allocation1 [shape = 'u32[144,128]{1,0:T(1,128)}', space=vmem, size = 0x12000, scoped, tag = 'internal scratch']
  %s0 = inlined_call_operand.vmem [shape: f32[16,34], index: 0, kind: input, shape index: {}]
  %s1 = inlined_call_operand.vmem [shape: f32[34,32], index: 1, kind: input, shape index: {}]
  %s2 = inlined_call_operand.vmem [shape: f32[33,128], index: 2, kind: input, shape index: {}]
  %s3 = inlined_call_operand.vmem [shape: f32[16,128], index: 3, kind: output, shape index: {}]
  %s4 = sld [smem:[#allocation0]]
  $region22: #{qnet_forward.1} parent=0
    _
  %s6 = ssub.s32 1, %s4
  %s7 = scalar_select 0, %s6, %s4
  // Predicated region
  $region2: #{qnet_forward.1} parent=0 // pred_check
    _
  $region3: #{qnet_forward.1} parent=0 // pred_check_branch
    %9 = sbr.rel (0) target = $region5
  $region4: #{qnet_forward.1} parent=0 // pred_region
    _
  $region5: #{qnet_forward.1} parent=0 // pred_fallthru
    _
  // Predicated region
  $region6: #{qnet_forward.1} parent=0 // pred_check
    _
  $region7: #{qnet_forward.1} parent=0 // pred_check_branch
    %11 = sbr.rel (0) target = $region9
  $region8: #{qnet_forward.1} parent=0 // pred_region
    _
  $region9: #{qnet_forward.1} parent=0 // pred_fallthru
    _
  // Predicated region
  $region10: #{qnet_forward.1} parent=0 // pred_check
    _
  $region11: #{qnet_forward.1} parent=0 // pred_check_branch
    %13 = sbr.rel (0) target = $region13
  $region12: #{qnet_forward.1} parent=0 // pred_region
    _
  $region13: #{qnet_forward.1} parent=0 // pred_fallthru
    _
  %v14 = vld [vmem:[%s0] sm:$0xff]
  %v15 = vld [vmem:[%s0 + $0x8] sm:$0xff]
  %v16 = vld [vmem:[%s1] sm:$0xff]
  %v17 = vld [vmem:[%s1 + $0x8] sm:$0xff]
  %v18 = vld [vmem:[%s1 + $0x10] sm:$0xff]
  %v19 = vld [vmem:[%s1 + $0x18] sm:$0xff]
  %v20 = vld [vmem:[%s1 + $0x20] sm:$0x3]
  %vm21 = vcmask 277504
  %v23 = vsel %vm21, %v14, 0
  %v26 = vsel %vm21, %v15, 0
  %vm28 = vcmask 1041408
  %v30 = vsel %vm28, %v20, 0
  %32 = vmatprep.subr.mxu0 0.0
  %33 = vmatpush1.msra.mxu0 %v16
  %34 = vmatprep.subr.mxu0 0.0
  %35 = vmatpush1.msra.mxu0 %v17
  %36 = vmatprep.subr.mxu0 0.0
  %37 = vmatpush1.msra.mxu0 %v18
  %38 = vmatprep.subr.mxu0 0.0
  %39 = vmatpush1.msra.mxu0 %v19
  %40 = vmatprep.subr.mxu0 0.0
  %41 = vmatpush1.msra.mxu0 %v30
  %42 = vmatprep.subr.mxu0 0.0
  %43 = vmatpush1.msra.mxu0 0.0
  %44 = vmatprep.subr.mxu0 0.0
  %45 = vmatpush1.msra.mxu0 0.0
  %46 = vmatprep.subr.mxu0 0.0
  %47 = vmatpush1.msra.mxu0 0.0
  %48 = vmatprep.subr.mxu0 0.0
  %49 = vmatpush1.msra.mxu0 0.0
  %50 = vmatprep.subr.mxu0 0.0
  %51 = vmatpush1.msra.mxu0 0.0
  %52 = vmatprep.subr.mxu0 0.0
  %53 = vmatpush1.msra.mxu0 0.0
  %54 = vmatprep.subr.mxu0 0.0
  %55 = vmatpush1.msra.mxu0 0.0
  %56 = vmatprep.subr.mxu0 0.0
  %57 = vmatpush1.msra.mxu0 0.0
  %58 = vmatprep.subr.mxu0 0.0
  %59 = vmatpush1.msra.mxu0 0.0
  %60 = vmatprep.subr.mxu0 0.0
  %61 = vmatpush1.msra.mxu0 0.0
  %62 = vmatprep.subr.mxu0 0.0
  %63 = vmatpush1.msra.mxu0 0.0
  %64 = vmatprep.subr.mxu0 0.0
  %65 = vmatpush1.msra.mxu0 0.0
  %66 = vmatprep.subr.mxu0 0.0
  %67 = vmatpush1.msra.mxu0 0.0
  %68 = vmatprep.subr.mxu0 0.0
  %69 = vmatpush1.msra.mxu0 0.0
  %70 = vmatprep.subr.mxu0 0.0
  %71 = vmatpush1.msra.mxu0 0.0
  %72 = vmatprep.subr.mxu0 0.0
  %73 = vmatpush1.msra.mxu0 0.0
  %74 = vmatprep.subr.mxu0 0.0
  %75 = vmatpush1.msra.mxu0 0.0
  %76 = vmatprep.subr.mxu0 0.0
  %77 = vmatpush1.msra.mxu0 0.0
  %78 = vmatprep.subr.mxu0 0.0
  %79 = vmatpush1.msra.mxu0 0.0
  %80 = vmatprep.subr.mxu0 0.0
  %81 = vmatpush1.msra.mxu0 0.0
  %82 = vmatprep.subr.mxu0 0.0
  %83 = vmatpush1.msra.mxu0 0.0
  %84 = vmatprep.subr.mxu0 0.0
  %85 = vmatpush1.msra.mxu0 0.0
  %86 = vmatprep.subr.mxu0 0.0
  %87 = vmatpush1.msra.mxu0 0.0
  %88 = vmatprep.subr.mxu0 0.0
  %89 = vmatpush1.msra.mxu0 0.0
  %90 = vmatprep.subr.mxu0 0.0
  %91 = vmatpush1.msra.mxu0 0.0
  %92 = vmatprep.subr.mxu0 0.0
  %93 = vmatpush1.msra.mxu0 0.0
  %94 = vmatprep.subr.mxu0 0.0
  %95 = vmatpush1.msra.mxu0 0.0
  %96 = vmatprep.mubr.f32.mxu0 0.0
  %97 = vmatmul.mubr.f32.gmra.mrb[0].mxu0 %v23
  %v98 = vpop.f32.mrb[0].mxu0
  %v99 = vadd.f32 0.0, %v98
  %v100 = vpop.f32.mrb[0].mxu0
  %101 = vmatprep.mubr.f32.mxu0 0.0
  %102 = vmatmul.mubr.f32.gmra.mrb[0].mxu0 %v26
  %v103 = vpop.f32.mrb[0].mxu0
  %v104 = vadd.f32 0.0, %v103
  %v105 = vpop.f32.mrb[0].mxu0
  %106 = vdwg.mxu0
  %v107 = vmul.f32 %v99, %v99
  %v108 = vmul.f32 %v104, %v104
  %vm109 = vcmask 261120
  %v110 = vsel %vm109, %v107, 0.0
  %111 = vadd.xlane.f32.xlu0 %v110
  %v112 = vpop.xlane.xlu0 %111
  %v113 = vsel %vm109, %v108, 0.0
  %114 = vadd.xlane.f32.xlu0 %v113
  %v115 = vpop.xlane.xlu0 %114
  %v116 = vmax.f32 %v112, 1e-24
  %v117 = vmax.f32 %v115, 1e-24
  %v118 = vrsqrt.pop %v116
  %v119 = vrsqrt.pop %v117
  %v120 = vmul.f32 %v99, %v118
  %v121 = vmul.f32 %v104, %v119
  %v122 = vmax.f32 %v120, 0.0
  %v123 = vmax.f32 %v121, 0.0
  %v124 = vld [vmem:[%s2] sm:$0xff]
  %v125 = vld [vmem:[%s2 + $0x8] sm:$0xff]
  %v126 = vld [vmem:[%s2 + $0x10] sm:$0xff]
  %v127 = vld [vmem:[%s2 + $0x18] sm:$0xff]
  %v128 = vld [vmem:[%s2 + $0x20] sm:$0x1]
  %v129 = vlaneseq
  %v130 = vshrl.u32 %v129, 7
  %v131 = vsub.s32 0, %v130
  %v132 = vrot.slane %v128, %v131
  %v134 = vsel %vm109, %v122, 0
  %v137 = vsel %vm109, %v123, 0
  %139 = vmatprep.subr.mxu0 0.0
  %140 = vmatpush1.msra.mxu0 %v124
  %141 = vmatprep.subr.mxu0 0.0
  %142 = vmatpush1.msra.mxu0 %v125
  %143 = vmatprep.subr.mxu0 0.0
  %144 = vmatpush1.msra.mxu0 %v126
  %145 = vmatprep.subr.mxu0 0.0
  %146 = vmatpush1.msra.mxu0 %v127
  %147 = vmatprep.subr.mxu0 0.0
  %148 = vmatpush1.msra.mxu0 0.0
  %149 = vmatprep.subr.mxu0 0.0
  %150 = vmatpush1.msra.mxu0 0.0
  %151 = vmatprep.subr.mxu0 0.0
  %152 = vmatpush1.msra.mxu0 0.0
  %153 = vmatprep.subr.mxu0 0.0
  %154 = vmatpush1.msra.mxu0 0.0
  %155 = vmatprep.subr.mxu0 0.0
  %156 = vmatpush1.msra.mxu0 0.0
  %157 = vmatprep.subr.mxu0 0.0
  %158 = vmatpush1.msra.mxu0 0.0
  %159 = vmatprep.subr.mxu0 0.0
  %160 = vmatpush1.msra.mxu0 0.0
  %161 = vmatprep.subr.mxu0 0.0
  %162 = vmatpush1.msra.mxu0 0.0
  %163 = vmatprep.subr.mxu0 0.0
  %164 = vmatpush1.msra.mxu0 0.0
  %165 = vmatprep.subr.mxu0 0.0
  %166 = vmatpush1.msra.mxu0 0.0
  %167 = vmatprep.subr.mxu0 0.0
  %168 = vmatpush1.msra.mxu0 0.0
  %169 = vmatprep.subr.mxu0 0.0
  %170 = vmatpush1.msra.mxu0 0.0
  %171 = vmatprep.subr.mxu0 0.0
  %172 = vmatpush1.msra.mxu0 0.0
  %173 = vmatprep.subr.mxu0 0.0
  %174 = vmatpush1.msra.mxu0 0.0
  %175 = vmatprep.subr.mxu0 0.0
  %176 = vmatpush1.msra.mxu0 0.0
  %177 = vmatprep.subr.mxu0 0.0
  %178 = vmatpush1.msra.mxu0 0.0
  %179 = vmatprep.subr.mxu0 0.0
  %180 = vmatpush1.msra.mxu0 0.0
  %181 = vmatprep.subr.mxu0 0.0
  %182 = vmatpush1.msra.mxu0 0.0
  %183 = vmatprep.subr.mxu0 0.0
  %184 = vmatpush1.msra.mxu0 0.0
  %185 = vmatprep.subr.mxu0 0.0
  %186 = vmatpush1.msra.mxu0 0.0
  %187 = vmatprep.subr.mxu0 0.0
  %188 = vmatpush1.msra.mxu0 0.0
  %189 = vmatprep.subr.mxu0 0.0
  %190 = vmatpush1.msra.mxu0 0.0
  %191 = vmatprep.subr.mxu0 0.0
  %192 = vmatpush1.msra.mxu0 0.0
  %193 = vmatprep.subr.mxu0 0.0
  %194 = vmatpush1.msra.mxu0 0.0
  %195 = vmatprep.subr.mxu0 0.0
  %196 = vmatpush1.msra.mxu0 0.0
  %197 = vmatprep.subr.mxu0 0.0
  %198 = vmatpush1.msra.mxu0 0.0
  %199 = vmatprep.subr.mxu0 0.0
  %200 = vmatpush1.msra.mxu0 0.0
  %201 = vmatprep.subr.mxu0 0.0
  %202 = vmatpush1.msra.mxu0 0.0
  %203 = vmatprep.mubr.f32.mxu0 0.0
  %204 = vmatmul.mubr.f32.gmra.mrb[0].mxu0 %v134
  %v205 = vpop.f32.mrb[0].mxu0
  %v206 = vadd.f32 %v132, %v205
  %v207 = vpop.f32.mrb[0].mxu0
  %208 = vmatprep.mubr.f32.mxu0 0.0
  %209 = vmatmul.mubr.f32.gmra.mrb[0].mxu0 %v137
  %v210 = vpop.f32.mrb[0].mxu0
  %v211 = vadd.f32 %v132, %v210
  %v212 = vpop.f32.mrb[0].mxu0
  %213 = vdwg.mxu0
  %214 = vmax.xlane.f32.xlu0 %v206
  %v215 = vpop.xlane.xlu0 %214
  %216 = vmax.xlane.f32.xlu0 %v211
  %v217 = vpop.xlane.xlu0 %216
  %v218 = vsub.f32 %v206, %v215
  %v219 = vsub.f32 %v211, %v217
  %v220 = vmul.f32 %v218, 1.442695
  %v221 = vpow.pop %v220
  %v222 = vmul.f32 %v219, 1.442695
  %v223 = vpow.pop %v222
  %224 = vadd.xlane.f32.xlu0 %v221
  %v225 = vpop.xlane.xlu0 %224
  %226 = vadd.xlane.f32.xlu0 %v223
  %v227 = vpop.xlane.xlu0 %226
  %v228 = vrcp.pop %v225
  %v229 = vrcp.pop %v227
  %v230 = vmul.f32 %v221, %v228
  %v231 = vmul.f32 %v223, %v229
  %232 = vst [vmem:[%s3] sm:$0xff] %v230
  %233 = vst [vmem:[%s3 + $0x8] sm:$0xff] %v231
  // Predicated region
  $region14: #{qnet_forward.1} parent=0 // pred_check
    _
  $region15: #{qnet_forward.1} parent=0 // pred_check_branch
    %235 = sbr.rel (0) target = $region17
  $region16: #{qnet_forward.1} parent=0 // pred_region
    _
  $region17: #{qnet_forward.1} parent=0 // pred_fallthru
    _
  // Predicated region
  $region18: #{qnet_forward.1} parent=0 // pred_check
    _
  $region19: #{qnet_forward.1} parent=0 // pred_check_branch
    %237 = sbr.rel (0) target = $region21
  $region20: #{qnet_forward.1} parent=0 // pred_region
    _
  $region21: #{qnet_forward.1} parent=0 // pred_fallthru
    _

</llo_original>
